<compile_context>
chip_gen: v7x
topology: tpu7x:2x2x1
jax: 0.10.0
libtpu: 0.0.40
codegen_flags: <defaults>
</compile_context>

<pallas_src>
import jax
import jax.numpy as jnp
from jax import lax
from jax.experimental import pallas as pl
from jax.experimental.pallas import tpu as pltpu

_LANE = 128


def reward_kernel(state_ref, action_ref, emb_tab_ref,
                  w1s_ref, w1e_ref, b1_ref, w2_ref, b2_ref,
                  out_ref):
    state = state_ref[...]                       # (TB, Sp)  f32/bf16
    action = action_ref[...]                     # (TB, 1)   int32
    emb_tab = emb_tab_ref[...]                   # (Ap, Ep)  f32/bf16
    w1s = w1s_ref[...]                           # (Sp, Hp)
    w1e = w1e_ref[...]                           # (Ep, Hp)

    TB = state.shape[0]
    Ap = emb_tab.shape[0]

    # Embedding lookup via one-hot matmul (MXU-friendly gather).
    # TODO(synk): for large action vocabularies (A >> 256) switch to a
    # scalar-prefetch / manual-DMA row gather instead of the O(B*A) one-hot.
    col_ids = lax.broadcasted_iota(jnp.int32, (TB, Ap), dimension=1)
    onehot = (col_ids == action).astype(emb_tab.dtype)             # (TB, Ap)
    emb = jnp.dot(onehot, emb_tab,
                  preferred_element_type=jnp.float32)              # (TB, Ep) f32

    # fc1 on the (fused) concat:  [state, emb] @ W1 == state @ W1s + emb @ W1e.
    h = (jnp.dot(state, w1s, preferred_element_type=jnp.float32)
         + jnp.dot(emb.astype(w1e.dtype), w1e,
                   preferred_element_type=jnp.float32)
         + b1_ref[...])                                            # (TB, Hp) f32
    h = jnp.maximum(h, 0.0)                                        # relu

    # fc2 (out_features == 1) off the MXU: VPU multiply, then an explicit
    # (well-supported) 2-D transpose + sublane reduce so the per-sample
    # reward ends up lane-major and the store below is a full-width,
    # unmasked lane-dense store.
    hw = h * w2_ref[...]                                           # (TB, Hp) VPU
    r_row = jnp.sum(hw.T, axis=0)                                  # (TB,) lane-major
    out_ref[0, :] = jax.nn.sigmoid(r_row + b2_ref[0, 0])           # (1, TB) dense store


def _round_up(n, m):
    return ((n + m - 1) // m) * m


def _pad_axis(x, target, axis):
    pad = target - x.shape[axis]
    if pad == 0:
        return x
    widths = [(0, 0)] * x.ndim
    widths[axis] = (0, pad)
    return jnp.pad(x, widths)


def reward_model_forward(state, action, params, *, batch_tile=128,
                         use_bf16=False):
    """state: (B, S) f32, action: (B,) int -> (B, 1) f32 reward."""
    B, S = state.shape
    emb_tab = params["emb"]
    A, E = emb_tab.shape
    w1s, w1e = params["w1s"], params["w1e"]
    b1, w2, b2 = params["b1"], params["w2"], params["b2"]
    H = w1s.shape[1]

    # Lane-align every feature dim (host-side, once).
    Sp, Ep, Hp, Ap = (_round_up(d, _LANE) for d in (S, E, H, A))
    TB = batch_tile                      # 128 works everywhere; 256 is a good pick on v6e/v7x.
    num_tiles = pl.cdiv(B, TB)
    Bp = num_tiles * TB

    state_p = _pad_axis(_pad_axis(state.astype(jnp.float32), Bp, 0), Sp, 1)
    action_p = _pad_axis(action.astype(jnp.int32).reshape(B, 1), Bp, 0)
    emb_p = _pad_axis(_pad_axis(emb_tab, Ap, 0), Ep, 1)
    w1s_p = _pad_axis(_pad_axis(w1s, Sp, 0), Hp, 1)
    w1e_p = _pad_axis(_pad_axis(w1e, Ep, 0), Hp, 1)
    b1_p = _pad_axis(b1, Hp, 1)                       # (1, Hp)
    w2_row = _pad_axis(w2.reshape(1, H), Hp, 1)       # (1, Hp) fc2 weight row (VPU path)
    b2_2d = b2.reshape(1, 1).astype(jnp.float32)

    if use_bf16:
        # MXU inputs only; accumulation, bias, relu, sigmoid stay f32.
        state_p = state_p.astype(jnp.bfloat16)
        emb_p = emb_p.astype(jnp.bfloat16)
        w1s_p = w1s_p.astype(jnp.bfloat16)
        w1e_p = w1e_p.astype(jnp.bfloat16)

    resident = lambda i: (0, 0)          # weights: fetched once, stay in VMEM across steps
    out = pl.pallas_call(
        reward_kernel,
        out_shape=jax.ShapeDtypeStruct((num_tiles, TB), jnp.float32),
        grid=(num_tiles,),
        in_specs=[
            pl.BlockSpec((TB, Sp), lambda i: (i, 0)),              # state (batch-tiled, pipelined)
            pl.BlockSpec((TB, 1), lambda i: (i, 0)),               # action ids
            pl.BlockSpec((Ap, Ep), resident),                      # embedding table
            pl.BlockSpec((Sp, Hp), resident),                      # fc1 weight (state part)
            pl.BlockSpec((Ep, Hp), resident),                      # fc1 weight (embedding part)
            pl.BlockSpec((1, Hp), resident),                       # fc1 bias
            pl.BlockSpec((1, Hp), resident),                       # fc2 weight row
            pl.BlockSpec(memory_space=pltpu.MemorySpace.SMEM),     # fc2 bias scalar
        ],
        out_specs=pl.BlockSpec((1, TB), lambda i: (i, 0)),         # lane-dense reward row
        compiler_params=pltpu.CompilerParams(
            dimension_semantics=("parallel",)),
    )(state_p, action_p, emb_p, w1s_p, w1e_p, b1_p, w2_row, b2_2d)

    return out.reshape(Bp, 1)[:B]


def init_params(key, state_size, action_size, hidden_size, embedding_dim):
    k = jax.random.split(key, 6)
    # Deterministic synthetic init (uniform, roughly matching PyTorch scales).
    emb = jax.random.normal(k[0], (action_size, embedding_dim), jnp.float32)
    bound1 = 1.0 / jnp.sqrt(state_size + embedding_dim)
    w1 = jax.random.uniform(k[1], (state_size + embedding_dim, hidden_size),
                            jnp.float32, -bound1, bound1)
    b1 = jax.random.uniform(k[2], (1, hidden_size), jnp.float32, -bound1, bound1)
    bound2 = 1.0 / jnp.sqrt(hidden_size)
    w2 = jax.random.uniform(k[3], (hidden_size, 1), jnp.float32, -bound2, bound2)
    b2 = jax.random.uniform(k[4], (1, 1), jnp.float32, -bound2, bound2)
    return {
        "emb": emb,
        "w1s": w1[:state_size],          # (S, H)
        "w1e": w1[state_size:],          # (E, H)
        "b1": b1,
        "w2": w2,
        "b2": b2,
    }


if __name__ == "__main__":
    B = 8
    STATE_SIZE = 32
    ACTION_SIZE = 16
    HIDDEN_SIZE = 32
    EMBED_DIM = 16

    key = jax.random.PRNGKey(0)
    k_params, k_state, k_action = jax.random.split(key, 3)

    params = init_params(k_params, STATE_SIZE, ACTION_SIZE, HIDDEN_SIZE, EMBED_DIM)
    state = jax.random.normal(k_state, (B, STATE_SIZE), jnp.float32)
    action = jax.random.randint(k_action, (B,), 0, ACTION_SIZE, jnp.int32)

    reward = reward_model_forward(state, action, params)
    reward = jax.block_until_ready(reward)

    # Sanity check against a pure-JAX reference of the same forward pass.
    emb_ref = params["emb"][action]
    x_ref = jnp.concatenate([state, emb_ref], axis=1)
    w1_full = jnp.concatenate([params["w1s"], params["w1e"]], axis=0)
    h_ref = jax.nn.relu(x_ref @ w1_full + params["b1"])
    r_ref = jax.nn.sigmoid(h_ref @ params["w2"] + params["b2"])

    assert reward.shape == (B, 1)
    assert jnp.allclose(reward, r_ref, atol=1e-5), "mismatch vs JAX reference"

    print("KERNEL_OK")
</pallas_src>

<mosaic_0001>
module attributes {stable_mosaic.version = 11 : i64} {
  func.func @reward_kernel(%arg0: i32, %arg1: memref<128x128xf32, #tpu.memory_space<vmem>>, %arg2: memref<128x1xi32, #tpu.memory_space<vmem>>, %arg3: memref<128x128xf32, #tpu.memory_space<vmem>>, %arg4: memref<128x128xf32, #tpu.memory_space<vmem>>, %arg5: memref<128x128xf32, #tpu.memory_space<vmem>>, %arg6: memref<1x128xf32, #tpu.memory_space<vmem>>, %arg7: memref<1x128xf32, #tpu.memory_space<vmem>>, %arg8: memref<1x1xf32, #tpu.memory_space<smem>>, %arg9: memref<1x128xf32, #tpu.memory_space<vmem>>) attributes {dimension_semantics = [#tpu.dimension_semantics<parallel>], iteration_bounds = array<i64: 1>, scalar_prefetch = 0 : i64, scratch_operands = 0 : i64, tpu.core_type = #tpu.core_type<tc>, window_params = [{transform_indices = @transform_0, window_bounds = array<i64: 128, 128>}, {transform_indices = @transform_1, window_bounds = array<i64: 128, 1>}, {pipeline_mode = #tpu.pipeline_mode<synchronous>, transform_indices = @transform_2, window_bounds = array<i64: 128, 128>}, {pipeline_mode = #tpu.pipeline_mode<synchronous>, transform_indices = @transform_3, window_bounds = array<i64: 128, 128>}, {pipeline_mode = #tpu.pipeline_mode<synchronous>, transform_indices = @transform_4, window_bounds = array<i64: 128, 128>}, {pipeline_mode = #tpu.pipeline_mode<synchronous>, transform_indices = @transform_5, window_bounds = array<i64: 1, 128>}, {pipeline_mode = #tpu.pipeline_mode<synchronous>, transform_indices = @transform_6, window_bounds = array<i64: 1, 128>}, {transform_indices = @transform_7, window_bounds = array<i64: 1, 1>}, {transform_indices = @transform_8, window_bounds = array<i64: 1, 128>}]} {
    %c0 = arith.constant 0 : index
    %c0_0 = arith.constant 0 : index
    %0 = vector.load %arg1[%c0, %c0_0] : memref<128x128xf32, #tpu.memory_space<vmem>>, vector<128x128xf32>
    %c0_1 = arith.constant 0 : index
    %c0_2 = arith.constant 0 : index
    %1 = vector.load %arg2[%c0_1, %c0_2] : memref<128x1xi32, #tpu.memory_space<vmem>>, vector<128x1xi32>
    %c0_3 = arith.constant 0 : index
    %c0_4 = arith.constant 0 : index
    %2 = vector.load %arg3[%c0_3, %c0_4] : memref<128x128xf32, #tpu.memory_space<vmem>>, vector<128x128xf32>
    %c0_5 = arith.constant 0 : index
    %c0_6 = arith.constant 0 : index
    %3 = vector.load %arg4[%c0_5, %c0_6] : memref<128x128xf32, #tpu.memory_space<vmem>>, vector<128x128xf32>
    %c0_7 = arith.constant 0 : index
    %c0_8 = arith.constant 0 : index
    %4 = vector.load %arg5[%c0_7, %c0_8] : memref<128x128xf32, #tpu.memory_space<vmem>>, vector<128x128xf32>
    %5 = tpu.iota {dimensions = array<i32: 1>} : vector<128x128xi32>
    %6 = vector.broadcast %1 : vector<128x1xi32> to vector<128x128xi32>
    %7 = arith.cmpi eq, %5, %6 : vector<128x128xi32>
    %8 = arith.extui %7 : vector<128x128xi1> to vector<128x128xi32>
    %9 = arith.sitofp %8 : vector<128x128xi32> to vector<128x128xf32>
    %cst = arith.constant dense<0.000000e+00> : vector<128x128xf32>
    %10 = tpu.matmul %9, %2, %cst {dimension_numbers = #tpu.dot_dimension_numbers<[1], [0], [0], [1], [0, 0, 1, 1], [], []>} : vector<128x128xf32>, vector<128x128xf32>, vector<128x128xf32> -> vector<128x128xf32>
    %cst_9 = arith.constant dense<0.000000e+00> : vector<128x128xf32>
    %11 = tpu.matmul %0, %3, %cst_9 {dimension_numbers = #tpu.dot_dimension_numbers<[1], [0], [0], [1], [0, 0, 1, 1], [], []>} : vector<128x128xf32>, vector<128x128xf32>, vector<128x128xf32> -> vector<128x128xf32>
    %cst_10 = arith.constant dense<0.000000e+00> : vector<128x128xf32>
    %12 = tpu.matmul %10, %4, %cst_10 {dimension_numbers = #tpu.dot_dimension_numbers<[1], [0], [0], [1], [0, 0, 1, 1], [], []>} : vector<128x128xf32>, vector<128x128xf32>, vector<128x128xf32> -> vector<128x128xf32>
    %13 = arith.addf %11, %12 : vector<128x128xf32>
    %c0_11 = arith.constant 0 : index
    %c0_12 = arith.constant 0 : index
    %14 = vector.load %arg6[%c0_11, %c0_12] : memref<1x128xf32, #tpu.memory_space<vmem>>, vector<1x128xf32>
    %15 = vector.broadcast %14 : vector<1x128xf32> to vector<128x128xf32>
    %16 = arith.addf %13, %15 : vector<128x128xf32>
    %cst_13 = arith.constant 0.000000e+00 : f32
    %17 = vector.broadcast %cst_13 : f32 to vector<128x128xf32>
    %18 = arith.maximumf %16, %17 : vector<128x128xf32>
    %c0_14 = arith.constant 0 : index
    %c0_15 = arith.constant 0 : index
    %19 = vector.load %arg7[%c0_14, %c0_15] : memref<1x128xf32, #tpu.memory_space<vmem>>, vector<1x128xf32>
    %20 = vector.broadcast %19 : vector<1x128xf32> to vector<128x128xf32>
    %21 = arith.mulf %18, %20 : vector<128x128xf32>
    %22 = tpu.transpose %21, [1, 0] : vector<128x128xf32> -> vector<128x128xf32>
    %cst_16 = arith.constant dense<0.000000e+00> : vector<128xf32>
    %23 = vector.multi_reduction <add>, %22, %cst_16 [0] : vector<128x128xf32> to vector<128xf32>
    %c0_17 = arith.constant 0 : index
    %c0_18 = arith.constant 0 : index
    %24 = memref.load %arg8[%c0_17, %c0_18] : memref<1x1xf32, #tpu.memory_space<smem>>
    %25 = vector.broadcast %24 : f32 to vector<128xf32>
    %26 = arith.addf %23, %25 : vector<128xf32>
    %27 = arith.negf %26 : vector<128xf32>
    %28 = math.exp %27 : vector<128xf32>
    %cst_19 = arith.constant 1.000000e+00 : f32
    %29 = vector.broadcast %cst_19 : f32 to vector<128xf32>
    %30 = arith.addf %29, %28 : vector<128xf32>
    %31 = arith.divf %29, %30 : vector<128xf32>
    %c0_20 = arith.constant 0 : index
    %c0_21 = arith.constant 0 : index
    %32 = vector.load %arg9[%c0_20, %c0_21] : memref<1x128xf32, #tpu.memory_space<vmem>>, vector<1x128xf32>
    %33 = vector.shape_cast %32 : vector<1x128xf32> to vector<128xf32>
    %34 = vector.shape_cast %31 : vector<128xf32> to vector<1x128xf32>
    tpu.vector_store %arg9[%c0_20, %c0_21], %34 {strides = array<i32>} : memref<1x128xf32, #tpu.memory_space<vmem>>, vector<1x128xf32>,
    return
  }
  func.func @transform_0(%arg0: i32) -> (i32, i32) {
    %c0_i32 = arith.constant 0 : i32
    %c0_i32_0 = arith.constant 0 : i32
    return %arg0, %c0_i32 : i32, i32
  }
  func.func @transform_1(%arg0: i32) -> (i32, i32) {
    %c0_i32 = arith.constant 0 : i32
    %c0_i32_0 = arith.constant 0 : i32
    return %arg0, %c0_i32 : i32, i32
  }
  func.func @transform_2(%arg0: i32) -> (i32, i32) {
    %c0_i32 = arith.constant 0 : i32
    %c0_i32_0 = arith.constant 0 : i32
    %c0_i32_1 = arith.constant 0 : i32
    return %c0_i32, %c0_i32_0 : i32, i32
  }
  func.func @transform_3(%arg0: i32) -> (i32, i32) {
    %c0_i32 = arith.constant 0 : i32
    %c0_i32_0 = arith.constant 0 : i32
    %c0_i32_1 = arith.constant 0 : i32
    return %c0_i32, %c0_i32_0 : i32, i32
  }
  func.func @transform_4(%arg0: i32) -> (i32, i32) {
    %c0_i32 = arith.constant 0 : i32
    %c0_i32_0 = arith.constant 0 : i32
    %c0_i32_1 = arith.constant 0 : i32
    return %c0_i32, %c0_i32_0 : i32, i32
  }
  func.func @transform_5(%arg0: i32) -> (i32, i32) {
    %c0_i32 = arith.constant 0 : i32
    %c0_i32_0 = arith.constant 0 : i32
    %c0_i32_1 = arith.constant 0 : i32
    return %c0_i32, %c0_i32_0 : i32, i32
  }
  func.func @transform_6(%arg0: i32) -> (i32, i32) {
    %c0_i32 = arith.constant 0 : i32
    %c0_i32_0 = arith.constant 0 : i32
    %c0_i32_1 = arith.constant 0 : i32
    return %c0_i32, %c0_i32_0 : i32, i32
  }
  func.func @transform_7(%arg0: i32) -> (i32, i32) {
    %c0_i32 = arith.constant 0 : i32
    %c0_i32_0 = arith.constant 0 : i32
    %c0_i32_1 = arith.constant 0 : i32
    return %c0_i32, %c0_i32_0 : i32, i32
  }
  func.func @transform_8(%arg0: i32) -> (i32, i32) {
    %c0_i32 = arith.constant 0 : i32
    %c0_i32_0 = arith.constant 0 : i32
    return %arg0, %c0_i32 : i32, i32
  }
}

</mosaic_0001>

<llo_original>
// kernel: tpu_custom_call.1
$region0: #{tpu_custom_call.1}
  #allocation0 [shape = 'u32[]', space=smem, size = 0x4, offset = 0x4, fixed_abs, tag = 'smem constant byte address 0x4 - core index']
  #allocation1 [shape = 'u32[144,128]{1,0:T(1,128)}', space=vmem, size = 0x12000, scoped, tag = 'internal scratch']
  #allocation2 [shape = 'f32[1,1]{1,0:T(1,128)S(6)}', space=smem, size = 0x200, scoped, tag = 'scoped memory for tpu_custom_call.1']
  %s0 = inlined_call_operand.vmem [shape: f32[128,128], index: 0, kind: input, shape index: {}]
  %s1 = inlined_call_operand.vmem [shape: s32[128,1], index: 1, kind: input, shape index: {}]
  %s2 = inlined_call_operand.hbm [shape: f32[128,128], index: 2, kind: input, shape index: {}]
  %s3 = inlined_call_operand.hbm [shape: f32[128,128], index: 3, kind: input, shape index: {}]
  %s4 = inlined_call_operand.hbm [shape: f32[128,128], index: 4, kind: input, shape index: {}]
  %s5 = inlined_call_operand.vmem [shape: f32[1,128], index: 5, kind: input, shape index: {}]
  %s6 = inlined_call_operand.vmem [shape: f32[1,128], index: 6, kind: input, shape index: {}]
  %s7 = inlined_call_operand.<no memory space> [shape: f32[1,1], index: 7, kind: input, shape index: {}]
  %s8 = inlined_call_operand.hbm [shape: f32[1,128], index: 8, kind: output, shape index: {}]
  %s9 = sld [smem:[#allocation0]]
  $region54: #{tpu_custom_call.1} parent=0
    _
  %s11 = ssub.s32 1, %s9
  %s12 = scalar_select 0, %s11, %s9
  %13 = sst [smem:[#allocation2]] %s7
  $region1: #{tpu_custom_call.1} parent=0
    #allocation3 [shape = 'u8[65536]{0}', space=vmem, size = 0x10000, scoped, tag = 'input window, operand 2, single buffered']
    #allocation4 [shape = 's32[1]{0}', space=sflag, size = 0x4, scoped, tag = 'scoped memory for tpu_custom_call.1']
    #allocation5 [shape = 's32[1]{0}', space=sflag, size = 0x4, scoped, tag = 'scoped memory for tpu_custom_call.1']
    #allocation6 [shape = 'u8[65536]{0}', space=vmem, size = 0x10000, scoped, tag = 'input window, operand 3, single buffered']
    #allocation7 [shape = 's32[1]{0}', space=sflag, size = 0x4, scoped, tag = 'scoped memory for tpu_custom_call.1']
    #allocation8 [shape = 'u8[65536]{0}', space=vmem, size = 0x10000, scoped, tag = 'input window, operand 4, single buffered']
    #allocation9 [shape = 'u8[512]{0}', space=vmem, size = 0x400, scoped, tag = 'output window, operand 0, single buffered']
    %14 = vsyncpa [#allocation4], 0
    %15 = vsyncpa [#allocation7], 0
    %16 = vsyncpa [#allocation5], 0
    // Predicated region
    $region2: #{tpu_custom_call.1} parent=1 // pred_check
      _
    $region3: #{tpu_custom_call.1} parent=1 // pred_check_branch
      %18 = sbr.rel (0) target = $region5
    $region4: #{tpu_custom_call.1} parent=1 // pred_region
      _
    $region5: #{tpu_custom_call.1} parent=1 // pred_fallthru
      _
    // Predicated region
    $region6: #{tpu_custom_call.1} parent=1 // pred_check
      _
    $region7: #{tpu_custom_call.1} parent=1 // pred_check_branch
      %20 = sbr.rel (0) target = $region9
    $region8: #{tpu_custom_call.1} parent=1 // pred_region
      _
    $region9: #{tpu_custom_call.1} parent=1 // pred_fallthru
      _
    // Predicated region
    $region10: #{tpu_custom_call.1} parent=1 // pred_check
      _
    $region11: #{tpu_custom_call.1} parent=1 // pred_check_branch
      %22 = sbr.rel (0) target = $region13
    $region12: #{tpu_custom_call.1} parent=1 // pred_region
      %s24 = ssub.s32 2048, 2048
      %25 = vsyncadd [#allocation4], %s24
      %s26 = sshll.u32 [#allocation3], 4
      %s27 = int_to_ptr.vmem [resolvable:$true] %s26
      %32 = dma.hbm_to_vmem [thread:$0]  %s2, 2048, %s27, [#allocation4], 128, 128, 8
    $region13: #{tpu_custom_call.1} parent=1 // pred_fallthru
      _
    // Predicated region
    $region14: #{tpu_custom_call.1} parent=1 // pred_check
      _
    $region15: #{tpu_custom_call.1} parent=1 // pred_check_branch
      %34 = sbr.rel (0) target = $region17
    $region16: #{tpu_custom_call.1} parent=1 // pred_region
      %s36 = ssub.s32 2048, 2048
      %37 = vsyncadd [#allocation7], %s36
      %s38 = sshll.u32 [#allocation6], 4
      %s39 = int_to_ptr.vmem [resolvable:$true] %s38
      %44 = dma.hbm_to_vmem [thread:$0]  %s3, 2048, %s39, [#allocation7], 128, 128, 8
    $region17: #{tpu_custom_call.1} parent=1 // pred_fallthru
      _
    // Predicated region
    $region18: #{tpu_custom_call.1} parent=1 // pred_check
      _
    $region19: #{tpu_custom_call.1} parent=1 // pred_check_branch
      %46 = sbr.rel (0) target = $region21
    $region20: #{tpu_custom_call.1} parent=1 // pred_region
      %s48 = ssub.s32 2048, 2048
      %49 = vsyncadd [#allocation7], %s48
      %s50 = sshll.u32 [#allocation8], 4
      %s51 = int_to_ptr.vmem [resolvable:$true] %s50
      %56 = dma.hbm_to_vmem [thread:$0]  %s4, 2048, %s51, [#allocation7], 128, 128, 8
    $region21: #{tpu_custom_call.1} parent=1 // pred_fallthru
      _
    // Predicated region
    $region22: #{tpu_custom_call.1} parent=1 // pred_check
      _
    $region23: #{tpu_custom_call.1} parent=1 // pred_check_branch
      %58 = sbr.rel (0) target = $region25
    $region24: #{tpu_custom_call.1} parent=1 // pred_region
      _
    $region25: #{tpu_custom_call.1} parent=1 // pred_fallthru
      _
    // Predicated region
    $region26: #{tpu_custom_call.1} parent=1 // pred_check
      _
    $region27: #{tpu_custom_call.1} parent=1 // pred_check_branch
      %60 = sbr.rel (0) target = $region29
    $region28: #{tpu_custom_call.1} parent=1 // pred_region
      _
    $region29: #{tpu_custom_call.1} parent=1 // pred_fallthru
      _
    // Predicated region
    $region30: #{tpu_custom_call.1} parent=1 // pred_check
      _
    $region31: #{tpu_custom_call.1} parent=1 // pred_check_branch
      %62 = sbr.rel (0) target = $region33
    $region32: #{tpu_custom_call.1} parent=1 // pred_region
      _
    $region33: #{tpu_custom_call.1} parent=1 // pred_fallthru
      _
    // Predicated region
    $region34: #{tpu_custom_call.1} parent=1 // pred_check
      _
    $region35: #{tpu_custom_call.1} parent=1 // pred_check_branch
      %64 = sbr.rel (0) target = $region37
    $region36: #{tpu_custom_call.1} parent=1 // pred_region
      %65 = dma.done [#allocation4], 2048
    $region37: #{tpu_custom_call.1} parent=1 // pred_fallthru
      _
    // Predicated region
    $region38: #{tpu_custom_call.1} parent=1 // pred_check
      _
    $region39: #{tpu_custom_call.1} parent=1 // pred_check_branch
      %67 = sbr.rel (0) target = $region41
    $region40: #{tpu_custom_call.1} parent=1 // pred_region
      %68 = dma.done [#allocation7], 2048
    $region41: #{tpu_custom_call.1} parent=1 // pred_fallthru
      _
    // Predicated region
    $region42: #{tpu_custom_call.1} parent=1 // pred_check
      _
    $region43: #{tpu_custom_call.1} parent=1 // pred_check_branch
      %70 = sbr.rel (0) target = $region45
    $region44: #{tpu_custom_call.1} parent=1 // pred_region
      %71 = dma.done [#allocation7], 2048
    $region45: #{tpu_custom_call.1} parent=1 // pred_fallthru
      _
    %v72 = vld [vmem:[%s0] sm:$0xff]
    %v73 = vld [vmem:[%s0 + $0x8] sm:$0xff]
    %v74 = vld [vmem:[%s0 + $0x10] sm:$0xff]
    %v75 = vld [vmem:[%s0 + $0x18] sm:$0xff]
    %v76 = vld [vmem:[%s0 + $0x20] sm:$0xff]
    %v77 = vld [vmem:[%s0 + $0x28] sm:$0xff]
    %v78 = vld [vmem:[%s0 + $0x30] sm:$0xff]
    %v79 = vld [vmem:[%s0 + $0x38] sm:$0xff]
    %v80 = vld [vmem:[%s0 + $0x40] sm:$0xff]
    %v81 = vld [vmem:[%s0 + $0x48] sm:$0xff]
    %v82 = vld [vmem:[%s0 + $0x50] sm:$0xff]
    %v83 = vld [vmem:[%s0 + $0x58] sm:$0xff]
    %v84 = vld [vmem:[%s0 + $0x60] sm:$0xff]
    %v85 = vld [vmem:[%s0 + $0x68] sm:$0xff]
    %v86 = vld [vmem:[%s0 + $0x70] sm:$0xff]
    %v87 = vld [vmem:[%s0 + $0x78] sm:$0xff]
    %v88 = vld [vmem:[%s1] sm:$0xff]
    %v89 = vld [vmem:[%s1 + $0x8] sm:$0xff]
    %v90 = vld [vmem:[%s1 + $0x10] sm:$0xff]
    %v91 = vld [vmem:[%s1 + $0x18] sm:$0xff]
    %v92 = vld [vmem:[%s1 + $0x20] sm:$0xff]
    %v93 = vld [vmem:[%s1 + $0x28] sm:$0xff]
    %v94 = vld [vmem:[%s1 + $0x30] sm:$0xff]
    %v95 = vld [vmem:[%s1 + $0x38] sm:$0xff]
    %v96 = vld [vmem:[%s1 + $0x40] sm:$0xff]
    %v97 = vld [vmem:[%s1 + $0x48] sm:$0xff]
    %v98 = vld [vmem:[%s1 + $0x50] sm:$0xff]
    %v99 = vld [vmem:[%s1 + $0x58] sm:$0xff]
    %v100 = vld [vmem:[%s1 + $0x60] sm:$0xff]
    %v101 = vld [vmem:[%s1 + $0x68] sm:$0xff]
    %v102 = vld [vmem:[%s1 + $0x70] sm:$0xff]
    %v103 = vld [vmem:[%s1 + $0x78] sm:$0xff]
    %v104 = vld [vmem:[#allocation3] sm:$0xff]
    %v105 = vld [vmem:[#allocation3 + $0x8] sm:$0xff]
    %v106 = vld [vmem:[#allocation3 + $0x10] sm:$0xff]
    %v107 = vld [vmem:[#allocation3 + $0x18] sm:$0xff]
    %v108 = vld [vmem:[#allocation3 + $0x20] sm:$0xff]
    %v109 = vld [vmem:[#allocation3 + $0x28] sm:$0xff]
    %v110 = vld [vmem:[#allocation3 + $0x30] sm:$0xff]
    %v111 = vld [vmem:[#allocation3 + $0x38] sm:$0xff]
    %v112 = vld [vmem:[#allocation3 + $0x40] sm:$0xff]
    %v113 = vld [vmem:[#allocation3 + $0x48] sm:$0xff]
    %v114 = vld [vmem:[#allocation3 + $0x50] sm:$0xff]
    %v115 = vld [vmem:[#allocation3 + $0x58] sm:$0xff]
    %v116 = vld [vmem:[#allocation3 + $0x60] sm:$0xff]
    %v117 = vld [vmem:[#allocation3 + $0x68] sm:$0xff]
    %v118 = vld [vmem:[#allocation3 + $0x70] sm:$0xff]
    %v119 = vld [vmem:[#allocation3 + $0x78] sm:$0xff]
    %v120 = vld [vmem:[#allocation6] sm:$0xff]
    %v121 = vld [vmem:[#allocation6 + $0x8] sm:$0xff]
    %v122 = vld [vmem:[#allocation6 + $0x10] sm:$0xff]
    %v123 = vld [vmem:[#allocation6 + $0x18] sm:$0xff]
    %v124 = vld [vmem:[#allocation6 + $0x20] sm:$0xff]
    %v125 = vld [vmem:[#allocation6 + $0x28] sm:$0xff]
    %v126 = vld [vmem:[#allocation6 + $0x30] sm:$0xff]
    %v127 = vld [vmem:[#allocation6 + $0x38] sm:$0xff]
    %v128 = vld [vmem:[#allocation6 + $0x40] sm:$0xff]
    %v129 = vld [vmem:[#allocation6 + $0x48] sm:$0xff]
    %v130 = vld [vmem:[#allocation6 + $0x50] sm:$0xff]
    %v131 = vld [vmem:[#allocation6 + $0x58] sm:$0xff]
    %v132 = vld [vmem:[#allocation6 + $0x60] sm:$0xff]
    %v133 = vld [vmem:[#allocation6 + $0x68] sm:$0xff]
    %v134 = vld [vmem:[#allocation6 + $0x70] sm:$0xff]
    %v135 = vld [vmem:[#allocation6 + $0x78] sm:$0xff]
    %v136 = vld [vmem:[#allocation8] sm:$0xff]
    %v137 = vld [vmem:[#allocation8 + $0x8] sm:$0xff]
    %v138 = vld [vmem:[#allocation8 + $0x10] sm:$0xff]
    %v139 = vld [vmem:[#allocation8 + $0x18] sm:$0xff]
    %v140 = vld [vmem:[#allocation8 + $0x20] sm:$0xff]
    %v141 = vld [vmem:[#allocation8 + $0x28] sm:$0xff]
    %v142 = vld [vmem:[#allocation8 + $0x30] sm:$0xff]
    %v143 = vld [vmem:[#allocation8 + $0x38] sm:$0xff]
    %v144 = vld [vmem:[#allocation8 + $0x40] sm:$0xff]
    %v145 = vld [vmem:[#allocation8 + $0x48] sm:$0xff]
    %v146 = vld [vmem:[#allocation8 + $0x50] sm:$0xff]
    %v147 = vld [vmem:[#allocation8 + $0x58] sm:$0xff]
    %v148 = vld [vmem:[#allocation8 + $0x60] sm:$0xff]
    %v149 = vld [vmem:[#allocation8 + $0x68] sm:$0xff]
    %v150 = vld [vmem:[#allocation8 + $0x70] sm:$0xff]
    %v151 = vld [vmem:[#allocation8 + $0x78] sm:$0xff]
    %v152 = vlaneseq
    %v153 = vand.u32 %v152, 127
    %154 = vset.pattern.permute.xlu0 0
    %155 = vperm.xlu0 %154, %v88
    %v156 = vpop.permute.xlu0 %155
    %157 = vset.pattern.permute.xlu0 0
    %158 = vperm.xlu0 %157, %v89
    %v159 = vpop.permute.xlu0 %158
    %160 = vset.pattern.permute.xlu0 0
    %161 = vperm.xlu0 %160, %v90
    %v162 = vpop.permute.xlu0 %161
    %163 = vset.pattern.permute.xlu0 0
    %164 = vperm.xlu0 %163, %v91
    %v165 = vpop.permute.xlu0 %164
    %166 = vset.pattern.permute.xlu0 0
    %167 = vperm.xlu0 %166, %v92
    %v168 = vpop.permute.xlu0 %167
    %169 = vset.pattern.permute.xlu0 0
    %170 = vperm.xlu0 %169, %v93
    %v171 = vpop.permute.xlu0 %170
    %172 = vset.pattern.permute.xlu0 0
    %173 = vperm.xlu0 %172, %v94
    %v174 = vpop.permute.xlu0 %173
    %175 = vset.pattern.permute.xlu0 0
    %176 = vperm.xlu0 %175, %v95
    %v177 = vpop.permute.xlu0 %176
    %178 = vset.pattern.permute.xlu0 0
    %179 = vperm.xlu0 %178, %v96
    %v180 = vpop.permute.xlu0 %179
    %181 = vset.pattern.permute.xlu0 0
    %182 = vperm.xlu0 %181, %v97
    %v183 = vpop.permute.xlu0 %182
    %184 = vset.pattern.permute.xlu0 0
    %185 = vperm.xlu0 %184, %v98
    %v186 = vpop.permute.xlu0 %185
    %187 = vset.pattern.permute.xlu0 0
    %188 = vperm.xlu0 %187, %v99
    %v189 = vpop.permute.xlu0 %188
    %190 = vset.pattern.permute.xlu0 0
    %191 = vperm.xlu0 %190, %v100
    %v192 = vpop.permute.xlu0 %191
    %193 = vset.pattern.permute.xlu0 0
    %194 = vperm.xlu0 %193, %v101
    %v195 = vpop.permute.xlu0 %194
    %196 = vset.pattern.permute.xlu0 0
    %197 = vperm.xlu0 %196, %v102
    %v198 = vpop.permute.xlu0 %197
    %199 = vset.pattern.permute.xlu0 0
    %200 = vperm.xlu0 %199, %v103
    %v201 = vpop.permute.xlu0 %200
    %vm202 = vcmp.eq.s32.totalorder %v153, %v156
    %vm203 = vcmp.eq.s32.totalorder %v153, %v159
    %vm204 = vcmp.eq.s32.totalorder %v153, %v162
    %vm205 = vcmp.eq.s32.totalorder %v153, %v165
    %vm206 = vcmp.eq.s32.totalorder %v153, %v168
    %vm207 = vcmp.eq.s32.totalorder %v153, %v171
    %vm208 = vcmp.eq.s32.totalorder %v153, %v174
    %vm209 = vcmp.eq.s32.totalorder %v153, %v177
    %vm210 = vcmp.eq.s32.totalorder %v153, %v180
    %vm211 = vcmp.eq.s32.totalorder %v153, %v183
    %vm212 = vcmp.eq.s32.totalorder %v153, %v186
    %vm213 = vcmp.eq.s32.totalorder %v153, %v189
    %vm214 = vcmp.eq.s32.totalorder %v153, %v192
    %vm215 = vcmp.eq.s32.totalorder %v153, %v195
    %vm216 = vcmp.eq.s32.totalorder %v153, %v198
    %vm217 = vcmp.eq.s32.totalorder %v153, %v201
    %v218 = vsel %vm202, 1, 0
    %v219 = vsel %vm203, 1, 0
    %v220 = vsel %vm204, 1, 0
    %v221 = vsel %vm205, 1, 0
    %v222 = vsel %vm206, 1, 0
    %v223 = vsel %vm207, 1, 0
    %v224 = vsel %vm208, 1, 0
    %v225 = vsel %vm209, 1, 0
    %v226 = vsel %vm210, 1, 0
    %v227 = vsel %vm211, 1, 0
    %v228 = vsel %vm212, 1, 0
    %v229 = vsel %vm213, 1, 0
    %v230 = vsel %vm214, 1, 0
    %v231 = vsel %vm215, 1, 0
    %v232 = vsel %vm216, 1, 0
    %v233 = vsel %vm217, 1, 0
    %v234 = vcvt.s32.f32 %v218
    %v235 = vcvt.s32.f32 %v219
    %v236 = vcvt.s32.f32 %v220
    %v237 = vcvt.s32.f32 %v221
    %v238 = vcvt.s32.f32 %v222
    %v239 = vcvt.s32.f32 %v223
    %v240 = vcvt.s32.f32 %v224
    %v241 = vcvt.s32.f32 %v225
    %v242 = vcvt.s32.f32 %v226
    %v243 = vcvt.s32.f32 %v227
    %v244 = vcvt.s32.f32 %v228
    %v245 = vcvt.s32.f32 %v229
    %v246 = vcvt.s32.f32 %v230
    %v247 = vcvt.s32.f32 %v231
    %v248 = vcvt.s32.f32 %v232
    %v249 = vcvt.s32.f32 %v233
    %250 = vmatprep.subr.mxu0 0.0
    %251 = vmatpush1.msra.mxu0 %v104
    %252 = vmatprep.subr.mxu0 0.0
    %253 = vmatpush1.msra.mxu0 %v105
    %254 = vmatprep.subr.mxu0 0.0
    %255 = vmatpush1.msra.mxu0 %v106
    %256 = vmatprep.subr.mxu0 0.0
    %257 = vmatpush1.msra.mxu0 %v107
    %258 = vmatprep.subr.mxu0 0.0
    %259 = vmatpush1.msra.mxu0 %v108
    %260 = vmatprep.subr.mxu0 0.0
    %261 = vmatpush1.msra.mxu0 %v109
    %262 = vmatprep.subr.mxu0 0.0
    %263 = vmatpush1.msra.mxu0 %v110
    %264 = vmatprep.subr.mxu0 0.0
    %265 = vmatpush1.msra.mxu0 %v111
    %266 = vmatprep.subr.mxu0 0.0
    %267 = vmatpush1.msra.mxu0 %v112
    %268 = vmatprep.subr.mxu0 0.0
    %269 = vmatpush1.msra.mxu0 %v113
    %270 = vmatprep.subr.mxu0 0.0
    %271 = vmatpush1.msra.mxu0 %v114
    %272 = vmatprep.subr.mxu0 0.0
    %273 = vmatpush1.msra.mxu0 %v115
    %274 = vmatprep.subr.mxu0 0.0
    %275 = vmatpush1.msra.mxu0 %v116
    %276 = vmatprep.subr.mxu0 0.0
    %277 = vmatpush1.msra.mxu0 %v117
    %278 = vmatprep.subr.mxu0 0.0
    %279 = vmatpush1.msra.mxu0 %v118
    %280 = vmatprep.subr.mxu0 0.0
    %281 = vmatpush1.msra.mxu0 %v119
    %282 = vmatprep.subr.mxu0 0.0
    %283 = vmatpush1.msra.mxu0 0.0
    %284 = vmatprep.subr.mxu0 0.0
    %285 = vmatpush1.msra.mxu0 0.0
    %286 = vmatprep.subr.mxu0 0.0
    %287 = vmatpush1.msra.mxu0 0.0
    %288 = vmatprep.subr.mxu0 0.0
    %289 = vmatpush1.msra.mxu0 0.0
    %290 = vmatprep.subr.mxu0 0.0
    %291 = vmatpush1.msra.mxu0 0.0
    %292 = vmatprep.subr.mxu0 0.0
    %293 = vmatpush1.msra.mxu0 0.0
    %294 = vmatprep.subr.mxu0 0.0
    %295 = vmatpush1.msra.mxu0 0.0
    %296 = vmatprep.subr.mxu0 0.0
    %297 = vmatpush1.msra.mxu0 0.0
    %298 = vmatprep.subr.mxu0 0.0
    %299 = vmatpush1.msra.mxu0 0.0
    %300 = vmatprep.subr.mxu0 0.0
    %301 = vmatpush1.msra.mxu0 0.0
    %302 = vmatprep.subr.mxu0 0.0
    %303 = vmatpush1.msra.mxu0 0.0
    %304 = vmatprep.subr.mxu0 0.0
    %305 = vmatpush1.msra.mxu0 0.0
    %306 = vmatprep.subr.mxu0 0.0
    %307 = vmatpush1.msra.mxu0 0.0
    %308 = vmatprep.subr.mxu0 0.0
    %309 = vmatpush1.msra.mxu0 0.0
    %310 = vmatprep.subr.mxu0 0.0
    %311 = vmatpush1.msra.mxu0 0.0
    %312 = vmatprep.subr.mxu0 0.0
    %313 = vmatpush1.msra.mxu0 0.0
    %314 = vmatprep.mubr.f32.mxu0 0.0
    %315 = vmatmul.mubr.f32.gmra.mrb[0].mxu0 %v234
    %v316 = vpop.f32.mrb[0].mxu0
    %v317 = vadd.f32 0.0, %v316
    %v318 = vpop.f32.mrb[0].mxu0
    %319 = vmatprep.mubr.f32.mxu0 0.0
    %320 = vmatmul.mubr.f32.gmra.mrb[0].mxu0 %v235
    %v321 = vpop.f32.mrb[0].mxu0
    %v322 = vadd.f32 0.0, %v321
    %v323 = vpop.f32.mrb[0].mxu0
    %324 = vmatprep.mubr.f32.mxu0 0.0
    %325 = vmatmul.mubr.f32.gmra.mrb[0].mxu0 %v236
    %v326 = vpop.f32.mrb[0].mxu0
    %v327 = vadd.f32 0.0, %v326
    %v328 = vpop.f32.mrb[0].mxu0
    %329 = vmatprep.mubr.f32.mxu0 0.0
    %330 = vmatmul.mubr.f32.gmra.mrb[0].mxu0 %v237
    %v331 = vpop.f32.mrb[0].mxu0
    %v332 = vadd.f32 0.0, %v331
    %v333 = vpop.f32.mrb[0].mxu0
    %334 = vmatprep.mubr.f32.mxu0 0.0
    %335 = vmatmul.mubr.f32.gmra.mrb[0].mxu0 %v238
    %v336 = vpop.f32.mrb[0].mxu0
    %v337 = vadd.f32 0.0, %v336
    %v338 = vpop.f32.mrb[0].mxu0
    %339 = vmatprep.mubr.f32.mxu0 0.0
    %340 = vmatmul.mubr.f32.gmra.mrb[0].mxu0 %v239
    %v341 = vpop.f32.mrb[0].mxu0
    %v342 = vadd.f32 0.0, %v341
    %v343 = vpop.f32.mrb[0].mxu0
    %344 = vmatprep.mubr.f32.mxu0 0.0
    %345 = vmatmul.mubr.f32.gmra.mrb[0].mxu0 %v240
    %v346 = vpop.f32.mrb[0].mxu0
    %v347 = vadd.f32 0.0, %v346
    %v348 = vpop.f32.mrb[0].mxu0
    %349 = vmatprep.mubr.f32.mxu0 0.0
    %350 = vmatmul.mubr.f32.gmra.mrb[0].mxu0 %v241
    %v351 = vpop.f32.mrb[0].mxu0
    %v352 = vadd.f32 0.0, %v351
    %v353 = vpop.f32.mrb[0].mxu0
    %354 = vmatprep.mubr.f32.mxu0 0.0
    %355 = vmatmul.mubr.f32.gmra.mrb[0].mxu0 %v242
    %v356 = vpop.f32.mrb[0].mxu0
    %v357 = vadd.f32 0.0, %v356
    %v358 = vpop.f32.mrb[0].mxu0
    %359 = vmatprep.mubr.f32.mxu0 0.0
    %360 = vmatmul.mubr.f32.gmra.mrb[0].mxu0 %v243
    %v361 = vpop.f32.mrb[0].mxu0
    %v362 = vadd.f32 0.0, %v361
    %v363 = vpop.f32.mrb[0].mxu0
    %364 = vmatprep.mubr.f32.mxu0 0.0
    %365 = vmatmul.mubr.f32.gmra.mrb[0].mxu0 %v244
    %v366 = vpop.f32.mrb[0].mxu0
    %v367 = vadd.f32 0.0, %v366
    %v368 = vpop.f32.mrb[0].mxu0
    %369 = vmatprep.mubr.f32.mxu0 0.0
    %370 = vmatmul.mubr.f32.gmra.mrb[0].mxu0 %v245
    %v371 = vpop.f32.mrb[0].mxu0
    %v372 = vadd.f32 0.0, %v371
    %v373 = vpop.f32.mrb[0].mxu0
    %374 = vmatprep.mubr.f32.mxu0 0.0
    %375 = vmatmul.mubr.f32.gmra.mrb[0].mxu0 %v246
    %v376 = vpop.f32.mrb[0].mxu0
    %v377 = vadd.f32 0.0, %v376
    %v378 = vpop.f32.mrb[0].mxu0
    %379 = vmatprep.mubr.f32.mxu0 0.0
    %380 = vmatmul.mubr.f32.gmra.mrb[0].mxu0 %v247
    %v381 = vpop.f32.mrb[0].mxu0
    %v382 = vadd.f32 0.0, %v381
    %v383 = vpop.f32.mrb[0].mxu0
    %384 = vmatprep.mubr.f32.mxu0 0.0
    %385 = vmatmul.mubr.f32.gmra.mrb[0].mxu0 %v248
    %v386 = vpop.f32.mrb[0].mxu0
    %v387 = vadd.f32 0.0, %v386
    %v388 = vpop.f32.mrb[0].mxu0
    %389 = vmatprep.mubr.f32.mxu0 0.0
    %390 = vmatmul.mubr.f32.gmra.mrb[0].mxu0 %v249
    %v391 = vpop.f32.mrb[0].mxu0
    %v392 = vadd.f32 0.0, %v391
    %v393 = vpop.f32.mrb[0].mxu0
    %394 = vdwg.mxu0
    %395 = vmatprep.subr.mxu0 0.0
    %396 = vmatpush1.msra.mxu0 %v136
    %397 = vmatprep.subr.mxu0 0.0
    %398 = vmatpush1.msra.mxu0 %v137
    %399 = vmatprep.subr.mxu0 0.0
    %400 = vmatpush1.msra.mxu0 %v138
    %401 = vmatprep.subr.mxu0 0.0
    %402 = vmatpush1.msra.mxu0 %v139
    %403 = vmatprep.subr.mxu0 0.0
    %404 = vmatpush1.msra.mxu0 %v140
    %405 = vmatprep.subr.mxu0 0.0
    %406 = vmatpush1.msra.mxu0 %v141
    %407 = vmatprep.subr.mxu0 0.0
    %408 = vmatpush1.msra.mxu0 %v142
    %409 = vmatprep.subr.mxu0 0.0
    %410 = vmatpush1.msra.mxu0 %v143
    %411 = vmatprep.subr.mxu0 0.0
    %412 = vmatpush1.msra.mxu0 %v144
    %413 = vmatprep.subr.mxu0 0.0
    %414 = vmatpush1.msra.mxu0 %v145
    %415 = vmatprep.subr.mxu0 0.0
    %416 = vmatpush1.msra.mxu0 %v146
    %417 = vmatprep.subr.mxu0 0.0
    %418 = vmatpush1.msra.mxu0 %v147
    %419 = vmatprep.subr.mxu0 0.0
    %420 = vmatpush1.msra.mxu0 %v148
    %421 = vmatprep.subr.mxu0 0.0
    %422 = vmatpush1.msra.mxu0 %v149
    %423 = vmatprep.subr.mxu0 0.0
    %424 = vmatpush1.msra.mxu0 %v150
    %425 = vmatprep.subr.mxu0 0.0
    %426 = vmatpush1.msra.mxu0 %v151
    %427 = vmatprep.subr.mxu0 0.0
    %428 = vmatpush1.msra.mxu0 0.0
    %429 = vmatprep.subr.mxu0 0.0
    %430 = vmatpush1.msra.mxu0 0.0
    %431 = vmatprep.subr.mxu0 0.0
    %432 = vmatpush1.msra.mxu0 0.0
    %433 = vmatprep.subr.mxu0 0.0
    %434 = vmatpush1.msra.mxu0 0.0
    %435 = vmatprep.subr.mxu0 0.0
    %436 = vmatpush1.msra.mxu0 0.0
    %437 = vmatprep.subr.mxu0 0.0
    %438 = vmatpush1.msra.mxu0 0.0
    %439 = vmatprep.subr.mxu0 0.0
    %440 = vmatpush1.msra.mxu0 0.0
    %441 = vmatprep.subr.mxu0 0.0
    %442 = vmatpush1.msra.mxu0 0.0
    %443 = vmatprep.subr.mxu0 0.0
    %444 = vmatpush1.msra.mxu0 0.0
    %445 = vmatprep.subr.mxu0 0.0
    %446 = vmatpush1.msra.mxu0 0.0
    %447 = vmatprep.subr.mxu0 0.0
    %448 = vmatpush1.msra.mxu0 0.0
    %449 = vmatprep.subr.mxu0 0.0
    %450 = vmatpush1.msra.mxu0 0.0
    %451 = vmatprep.subr.mxu0 0.0
    %452 = vmatpush1.msra.mxu0 0.0
    %453 = vmatprep.subr.mxu0 0.0
    %454 = vmatpush1.msra.mxu0 0.0
    %455 = vmatprep.subr.mxu0 0.0
    %456 = vmatpush1.msra.mxu0 0.0
    %457 = vmatprep.subr.mxu0 0.0
    %458 = vmatpush1.msra.mxu0 0.0
    %459 = vmatprep.mubr.f32.mxu0 0.0
    %460 = vmatmul.mubr.f32.gmra.mrb[0].mxu0 %v317
    %v461 = vpop.f32.mrb[0].mxu0
    %v462 = vadd.f32 0.0, %v461
    %v463 = vpop.f32.mrb[0].mxu0
    %464 = vmatprep.mubr.f32.mxu0 0.0
    %465 = vmatmul.mubr.f32.gmra.mrb[0].mxu0 %v322
    %v466 = vpop.f32.mrb[0].mxu0
    %v467 = vadd.f32 0.0, %v466
    %v468 = vpop.f32.mrb[0].mxu0
    %469 = vmatprep.mubr.f32.mxu0 0.0
    %470 = vmatmul.mubr.f32.gmra.mrb[0].mxu0 %v327
    %v471 = vpop.f32.mrb[0].mxu0
    %v472 = vadd.f32 0.0, %v471
    %v473 = vpop.f32.mrb[0].mxu0
    %474 = vmatprep.mubr.f32.mxu0 0.0
    %475 = vmatmul.mubr.f32.gmra.mrb[0].mxu0 %v332
    %v476 = vpop.f32.mrb[0].mxu0
    %v477 = vadd.f32 0.0, %v476
    %v478 = vpop.f32.mrb[0].mxu0
    %479 = vmatprep.mubr.f32.mxu0 0.0
    %480 = vmatmul.mubr.f32.gmra.mrb[0].mxu0 %v337
    %v481 = vpop.f32.mrb[0].mxu0
    %v482 = vadd.f32 0.0, %v481
    %v483 = vpop.f32.mrb[0].mxu0
    %484 = vmatprep.mubr.f32.mxu0 0.0
    %485 = vmatmul.mubr.f32.gmra.mrb[0].mxu0 %v342
    %v486 = vpop.f32.mrb[0].mxu0
    %v487 = vadd.f32 0.0, %v486
    %v488 = vpop.f32.mrb[0].mxu0
    %489 = vmatprep.mubr.f32.mxu0 0.0
    %490 = vmatmul.mubr.f32.gmra.mrb[0].mxu0 %v347
    %v491 = vpop.f32.mrb[0].mxu0
    %v492 = vadd.f32 0.0, %v491
    %v493 = vpop.f32.mrb[0].mxu0
    %494 = vmatprep.mubr.f32.mxu0 0.0
    %495 = vmatmul.mubr.f32.gmra.mrb[0].mxu0 %v352
    %v496 = vpop.f32.mrb[0].mxu0
    %v497 = vadd.f32 0.0, %v496
    %v498 = vpop.f32.mrb[0].mxu0
    %499 = vmatprep.mubr.f32.mxu0 0.0
    %500 = vmatmul.mubr.f32.gmra.mrb[0].mxu0 %v357
    %v501 = vpop.f32.mrb[0].mxu0
    %v502 = vadd.f32 0.0, %v501
    %v503 = vpop.f32.mrb[0].mxu0
    %504 = vmatprep.mubr.f32.mxu0 0.0
    %505 = vmatmul.mubr.f32.gmra.mrb[0].mxu0 %v362
    %v506 = vpop.f32.mrb[0].mxu0
    %v507 = vadd.f32 0.0, %v506
    %v508 = vpop.f32.mrb[0].mxu0
    %509 = vmatprep.mubr.f32.mxu0 0.0
    %510 = vmatmul.mubr.f32.gmra.mrb[0].mxu0 %v367
    %v511 = vpop.f32.mrb[0].mxu0
    %v512 = vadd.f32 0.0, %v511
    %v513 = vpop.f32.mrb[0].mxu0
    %514 = vmatprep.mubr.f32.mxu0 0.0
    %515 = vmatmul.mubr.f32.gmra.mrb[0].mxu0 %v372
    %v516 = vpop.f32.mrb[0].mxu0
    %v517 = vadd.f32 0.0, %v516
    %v518 = vpop.f32.mrb[0].mxu0
    %519 = vmatprep.mubr.f32.mxu0 0.0
    %520 = vmatmul.mubr.f32.gmra.mrb[0].mxu0 %v377
    %v521 = vpop.f32.mrb[0].mxu0
    %v522 = vadd.f32 0.0, %v521
    %v523 = vpop.f32.mrb[0].mxu0
    %524 = vmatprep.mubr.f32.mxu0 0.0
    %525 = vmatmul.mubr.f32.gmra.mrb[0].mxu0 %v382
    %v526 = vpop.f32.mrb[0].mxu0
    %v527 = vadd.f32 0.0, %v526
    %v528 = vpop.f32.mrb[0].mxu0
    %529 = vmatprep.mubr.f32.mxu0 0.0
    %530 = vmatmul.mubr.f32.gmra.mrb[0].mxu0 %v387
    %v531 = vpop.f32.mrb[0].mxu0
    %v532 = vadd.f32 0.0, %v531
    %v533 = vpop.f32.mrb[0].mxu0
    %534 = vmatprep.mubr.f32.mxu0 0.0
    %535 = vmatmul.mubr.f32.gmra.mrb[0].mxu0 %v392
    %v536 = vpop.f32.mrb[0].mxu0
    %v537 = vadd.f32 0.0, %v536
    %v538 = vpop.f32.mrb[0].mxu0
    %539 = vdwg.mxu0
    %540 = vmatprep.subr.mxu0 0.0
    %541 = vmatpush1.msra.mxu0 %v120
    %542 = vmatprep.subr.mxu0 0.0
    %543 = vmatpush1.msra.mxu0 %v121
    %544 = vmatprep.subr.mxu0 0.0
    %545 = vmatpush1.msra.mxu0 %v122
    %546 = vmatprep.subr.mxu0 0.0
    %547 = vmatpush1.msra.mxu0 %v123
    %548 = vmatprep.subr.mxu0 0.0
    %549 = vmatpush1.msra.mxu0 %v124
    %550 = vmatprep.subr.mxu0 0.0
    %551 = vmatpush1.msra.mxu0 %v125
    %552 = vmatprep.subr.mxu0 0.0
    %553 = vmatpush1.msra.mxu0 %v126
    %554 = vmatprep.subr.mxu0 0.0
    %555 = vmatpush1.msra.mxu0 %v127
    %556 = vmatprep.subr.mxu0 0.0
    %557 = vmatpush1.msra.mxu0 %v128
    %558 = vmatprep.subr.mxu0 0.0
    %559 = vmatpush1.msra.mxu0 %v129
    %560 = vmatprep.subr.mxu0 0.0
    %561 = vmatpush1.msra.mxu0 %v130
    %562 = vmatprep.subr.mxu0 0.0
    %563 = vmatpush1.msra.mxu0 %v131
    %564 = vmatprep.subr.mxu0 0.0
    %565 = vmatpush1.msra.mxu0 %v132
    %566 = vmatprep.subr.mxu0 0.0
    %567 = vmatpush1.msra.mxu0 %v133
    %568 = vmatprep.subr.mxu0 0.0
    %569 = vmatpush1.msra.mxu0 %v134
    %570 = vmatprep.subr.mxu0 0.0
    %571 = vmatpush1.msra.mxu0 %v135
    %572 = vmatprep.subr.mxu0 0.0
    %573 = vmatpush1.msra.mxu0 0.0
    %574 = vmatprep.subr.mxu0 0.0
    %575 = vmatpush1.msra.mxu0 0.0
    %576 = vmatprep.subr.mxu0 0.0
    %577 = vmatpush1.msra.mxu0 0.0
    %578 = vmatprep.subr.mxu0 0.0
    %579 = vmatpush1.msra.mxu0 0.0
    %580 = vmatprep.subr.mxu0 0.0
    %581 = vmatpush1.msra.mxu0 0.0
    %582 = vmatprep.subr.mxu0 0.0
    %583 = vmatpush1.msra.mxu0 0.0
    %584 = vmatprep.subr.mxu0 0.0
    %585 = vmatpush1.msra.mxu0 0.0
    %586 = vmatprep.subr.mxu0 0.0
    %587 = vmatpush1.msra.mxu0 0.0
    %588 = vmatprep.subr.mxu0 0.0
    %589 = vmatpush1.msra.mxu0 0.0
    %590 = vmatprep.subr.mxu0 0.0
    %591 = vmatpush1.msra.mxu0 0.0
    %592 = vmatprep.subr.mxu0 0.0
    %593 = vmatpush1.msra.mxu0 0.0
    %594 = vmatprep.subr.mxu0 0.0
    %595 = vmatpush1.msra.mxu0 0.0
    %596 = vmatprep.subr.mxu0 0.0
    %597 = vmatpush1.msra.mxu0 0.0
    %598 = vmatprep.subr.mxu0 0.0
    %599 = vmatpush1.msra.mxu0 0.0
    %600 = vmatprep.subr.mxu0 0.0
    %601 = vmatpush1.msra.mxu0 0.0
    %602 = vmatprep.subr.mxu0 0.0
    %603 = vmatpush1.msra.mxu0 0.0
    %604 = vmatprep.mubr.f32.mxu0 0.0
    %605 = vmatmul.mubr.f32.gmra.mrb[0].mxu0 %v72
    %v606 = vpop.f32.mrb[0].mxu0
    %v607 = vadd.f32 %v462, %v606
    %v608 = vpop.f32.mrb[0].mxu0
    %609 = vmatprep.mubr.f32.mxu0 0.0
    %610 = vmatmul.mubr.f32.gmra.mrb[0].mxu0 %v73
    %v611 = vpop.f32.mrb[0].mxu0
    %v612 = vadd.f32 %v467, %v611
    %v613 = vpop.f32.mrb[0].mxu0
    %614 = vmatprep.mubr.f32.mxu0 0.0
    %615 = vmatmul.mubr.f32.gmra.mrb[0].mxu0 %v74
    %v616 = vpop.f32.mrb[0].mxu0
    %v617 = vadd.f32 %v472, %v616
    %v618 = vpop.f32.mrb[0].mxu0
    %619 = vmatprep.mubr.f32.mxu0 0.0
    %620 = vmatmul.mubr.f32.gmra.mrb[0].mxu0 %v75
    %v621 = vpop.f32.mrb[0].mxu0
    %v622 = vadd.f32 %v477, %v621
    %v623 = vpop.f32.mrb[0].mxu0
    %624 = vmatprep.mubr.f32.mxu0 0.0
    %625 = vmatmul.mubr.f32.gmra.mrb[0].mxu0 %v76
    %v626 = vpop.f32.mrb[0].mxu0
    %v627 = vadd.f32 %v482, %v626
    %v628 = vpop.f32.mrb[0].mxu0
    %629 = vmatprep.mubr.f32.mxu0 0.0
    %630 = vmatmul.mubr.f32.gmra.mrb[0].mxu0 %v77
    %v631 = vpop.f32.mrb[0].mxu0
    %v632 = vadd.f32 %v487, %v631
    %v633 = vpop.f32.mrb[0].mxu0
    %634 = vmatprep.mubr.f32.mxu0 0.0
    %635 = vmatmul.mubr.f32.gmra.mrb[0].mxu0 %v78
    %v636 = vpop.f32.mrb[0].mxu0
    %v637 = vadd.f32 %v492, %v636
    %v638 = vpop.f32.mrb[0].mxu0
    %639 = vmatprep.mubr.f32.mxu0 0.0
    %640 = vmatmul.mubr.f32.gmra.mrb[0].mxu0 %v79
    %v641 = vpop.f32.mrb[0].mxu0
    %v642 = vadd.f32 %v497, %v641
    %v643 = vpop.f32.mrb[0].mxu0
    %644 = vmatprep.mubr.f32.mxu0 0.0
    %645 = vmatmul.mubr.f32.gmra.mrb[0].mxu0 %v80
    %v646 = vpop.f32.mrb[0].mxu0
    %v647 = vadd.f32 %v502, %v646
    %v648 = vpop.f32.mrb[0].mxu0
    %649 = vmatprep.mubr.f32.mxu0 0.0
    %650 = vmatmul.mubr.f32.gmra.mrb[0].mxu0 %v81
    %v651 = vpop.f32.mrb[0].mxu0
    %v652 = vadd.f32 %v507, %v651
    %v653 = vpop.f32.mrb[0].mxu0
    %654 = vmatprep.mubr.f32.mxu0 0.0
    %655 = vmatmul.mubr.f32.gmra.mrb[0].mxu0 %v82
    %v656 = vpop.f32.mrb[0].mxu0
    %v657 = vadd.f32 %v512, %v656
    %v658 = vpop.f32.mrb[0].mxu0
    %659 = vmatprep.mubr.f32.mxu0 0.0
    %660 = vmatmul.mubr.f32.gmra.mrb[0].mxu0 %v83
    %v661 = vpop.f32.mrb[0].mxu0
    %v662 = vadd.f32 %v517, %v661
    %v663 = vpop.f32.mrb[0].mxu0
    %664 = vmatprep.mubr.f32.mxu0 0.0
    %665 = vmatmul.mubr.f32.gmra.mrb[0].mxu0 %v84
    %v666 = vpop.f32.mrb[0].mxu0
    %v667 = vadd.f32 %v522, %v666
    %v668 = vpop.f32.mrb[0].mxu0
    %669 = vmatprep.mubr.f32.mxu0 0.0
    %670 = vmatmul.mubr.f32.gmra.mrb[0].mxu0 %v85
    %v671 = vpop.f32.mrb[0].mxu0
    %v672 = vadd.f32 %v527, %v671
    %v673 = vpop.f32.mrb[0].mxu0
    %674 = vmatprep.mubr.f32.mxu0 0.0
    %675 = vmatmul.mubr.f32.gmra.mrb[0].mxu0 %v86
    %v676 = vpop.f32.mrb[0].mxu0
    %v677 = vadd.f32 %v532, %v676
    %v678 = vpop.f32.mrb[0].mxu0
    %679 = vmatprep.mubr.f32.mxu0 0.0
    %680 = vmatmul.mubr.f32.gmra.mrb[0].mxu0 %v87
    %v681 = vpop.f32.mrb[0].mxu0
    %v682 = vadd.f32 %v537, %v681
    %v683 = vpop.f32.mrb[0].mxu0
    %684 = vdwg.mxu0
    %v685 = vld [vmem:[%s5] sm:$0x1]
    %v687 = vlaneseq
    %v688 = vshrl.u32 %v687, 7
    %v689 = vsub.s32 0, %v688
    %v690 = vrot.slane %v685, %v689
    %v692 = vadd.f32 %v607, %v690
    %v693 = vadd.f32 %v612, %v690
    %v694 = vadd.f32 %v617, %v690
    %v695 = vadd.f32 %v622, %v690
    %v696 = vadd.f32 %v627, %v690
    %v697 = vadd.f32 %v632, %v690
    %v698 = vadd.f32 %v637, %v690
    %v699 = vadd.f32 %v642, %v690
    %v700 = vadd.f32 %v647, %v690
    %v701 = vadd.f32 %v652, %v690
    %v702 = vadd.f32 %v657, %v690
    %v703 = vadd.f32 %v662, %v690
    %v704 = vadd.f32 %v667, %v690
    %v705 = vadd.f32 %v672, %v690
    %v706 = vadd.f32 %v677, %v690
    %v707 = vadd.f32 %v682, %v690
    %v708 = vmax.f32 %v692, 0.0
    %v709 = vmax.f32 %v693, 0.0
    %v710 = vmax.f32 %v694, 0.0
    %v711 = vmax.f32 %v695, 0.0
    %v712 = vmax.f32 %v696, 0.0
    %v713 = vmax.f32 %v697, 0.0
    %v714 = vmax.f32 %v698, 0.0
    %v715 = vmax.f32 %v699, 0.0
    %v716 = vmax.f32 %v700, 0.0
    %v717 = vmax.f32 %v701, 0.0
    %v718 = vmax.f32 %v702, 0.0
    %v719 = vmax.f32 %v703, 0.0
    %v720 = vmax.f32 %v704, 0.0
    %v721 = vmax.f32 %v705, 0.0
    %v722 = vmax.f32 %v706, 0.0
    %v723 = vmax.f32 %v707, 0.0
    %v724 = vld [vmem:[%s6] sm:$0x1]
    %v726 = vlaneseq
    %v727 = vshrl.u32 %v726, 7
    %v728 = vsub.s32 0, %v727
    %v729 = vrot.slane %v724, %v728
    %v731 = vmul.f32 %v708, %v729
    %v732 = vmul.f32 %v709, %v729
    %v733 = vmul.f32 %v710, %v729
    %v734 = vmul.f32 %v711, %v729
    %v735 = vmul.f32 %v712, %v729
    %v736 = vmul.f32 %v713, %v729
    %v737 = vmul.f32 %v714, %v729
    %v738 = vmul.f32 %v715, %v729
    %v739 = vmul.f32 %v716, %v729
    %v740 = vmul.f32 %v717, %v729
    %v741 = vmul.f32 %v718, %v729
    %v742 = vmul.f32 %v719, %v729
    %v743 = vmul.f32 %v720, %v729
    %v744 = vmul.f32 %v721, %v729
    %v745 = vmul.f32 %v722, %v729
    %v746 = vmul.f32 %v723, %v729
    %747 = vxpose.xlu0.b32.start [1/16] %v731, 128
    %748 = vxpose.xlu0.b32.cont [2/16] %v732, 128
    %749 = vxpose.xlu0.b32.cont [3/16] %v733, 128
    %750 = vxpose.xlu0.b32.cont [4/16] %v734, 128
    %751 = vxpose.xlu0.b32.cont [5/16] %v735, 128
    %752 = vxpose.xlu0.b32.cont [6/16] %v736, 128
    %753 = vxpose.xlu0.b32.cont [7/16] %v737, 128
    %754 = vxpose.xlu0.b32.cont [8/16] %v738, 128
    %755 = vxpose.xlu0.b32.cont [9/16] %v739, 128
    %756 = vxpose.xlu0.b32.cont [10/16] %v740, 128
    %757 = vxpose.xlu0.b32.cont [11/16] %v741, 128
    %758 = vxpose.xlu0.b32.cont [12/16] %v742, 128
    %759 = vxpose.xlu0.b32.cont [13/16] %v743, 128
    %760 = vxpose.xlu0.b32.cont [14/16] %v744, 128
    %761 = vxpose.xlu0.b32.cont [15/16] %v745, 128
    %762 = vxpose.xlu0.b32.end [16/16] %v746, 128
    %v763 = vpop.trf.xlu0
    %v764 = vpop.trf.xlu0
    %v765 = vpop.trf.xlu0
    %v766 = vpop.trf.xlu0
    %v767 = vpop.trf.xlu0
    %v768 = vpop.trf.xlu0
    %v769 = vpop.trf.xlu0
    %v770 = vpop.trf.xlu0
    %v771 = vpop.trf.xlu0
    %v772 = vpop.trf.xlu0
    %v773 = vpop.trf.xlu0
    %v774 = vpop.trf.xlu0
    %v775 = vpop.trf.xlu0
    %v776 = vpop.trf.xlu0
    %v777 = vpop.trf.xlu0
    %v778 = vpop.trf.xlu0
    %v779 = vadd.f32 %v763, %v764
    %v780 = vadd.f32 %v779, %v765
    %v781 = vadd.f32 %v780, %v766
    %v782 = vadd.f32 %v781, %v767
    %v783 = vadd.f32 %v782, %v768
    %v784 = vadd.f32 %v783, %v769
    %v785 = vadd.f32 %v784, %v770
    %v786 = vadd.f32 %v785, %v771
    %v787 = vadd.f32 %v786, %v772
    %v788 = vadd.f32 %v787, %v773
    %v789 = vadd.f32 %v788, %v774
    %v790 = vadd.f32 %v789, %v775
    %v791 = vadd.f32 %v790, %v776
    %v792 = vadd.f32 %v791, %v777
    %v793 = vadd.f32 %v792, %v778
    %v794 = vrot.slane %v793, 4
    %v795 = vadd.f32 %v793, %v794
    %v796 = vrot.slane %v795, 2
    %v797 = vadd.f32 %v795, %v796
    %v798 = vrot.slane %v797, 1
    %v799 = vadd.f32 %v797, %v798
    %s800 = sld [smem:[#allocation2]]
    %v801 = vstv %s800
    %v802 = vadd.f32 %v799, %v801
    %v803 = vxor.u32 %v802, 2147483648
    %v804 = vmul.f32 %v803, 1.442695
    %v805 = vpow.pop %v804
    %v806 = vadd.f32 %v805, 1.0
    %v807 = vrcp.pop %v806
    %v808 = vmul.f32 1.0, %v807
    %809 = vst [vmem:[#allocation9] sm:$0x1] %v808
    // Predicated region
    $region46: #{tpu_custom_call.1} parent=1 // pred_check
      _
    $region47: #{tpu_custom_call.1} parent=1 // pred_check_branch
      %811 = sbr.rel (0) target = $region49
    $region48: #{tpu_custom_call.1} parent=1 // pred_region
      %s813 = ssub.s32 16, 16
      %814 = vsyncadd [#allocation5], %s813
      %s816 = sshll.u32 [#allocation9], 4
      %s817 = int_to_ptr.vmem [resolvable:$true] %s816
      %819 = dma.vmem_to_hbm [thread:$0]  %s817, 16, %s8, [#allocation5]
    $region49: #{tpu_custom_call.1} parent=1 // pred_fallthru
      _
    // Predicated region
    $region50: #{tpu_custom_call.1} parent=1 // pred_check
      _
    $region51: #{tpu_custom_call.1} parent=1 // pred_check_branch
      %821 = sbr.rel (0) target = $region53
    $region52: #{tpu_custom_call.1} parent=1 // pred_region
      %822 = dma.done [#allocation5], 16
    $region53: #{tpu_custom_call.1} parent=1 // pred_fallthru
      _
    %823 = vsyncpa [#allocation4], 1
    %824 = vsyncpa [#allocation7], 1
    %825 = vsyncpa [#allocation5], 1

</llo_original>
